<compile_context>
chip_gen: v7x
topology: tpu7x:2x2x1
jax: 0.10.0
libtpu: 0.0.40
codegen_flags: <defaults>
</compile_context>

<pallas_src>
import math

import numpy as np
import jax
import jax.numpy as jnp
from jax.experimental import pallas as pl
from jax.experimental.pallas import tpu as pltpu


# ----------------------------------------------------------------------------
# Parameter setup (glue, plain numpy/JAX) — matches the PyTorch _precompute
# ----------------------------------------------------------------------------
def _plateau(length, first, middle, last):
    z = np.full((length,), float(middle), dtype=np.float64)
    z[0] = float(first)
    z[-1] = float(last)
    return z


def precompute_dst_matrix(length, dst_type=2, dtype=jnp.float32):
    L = length
    assert 1 <= L
    assert 1 <= dst_type <= 4
    n = np.arange(1, L + 1, dtype=np.float64)
    k = np.arange(1, L + 1, dtype=np.float64)
    if dst_type in (2, 4):
        n = n - 0.5
    if dst_type in (3, 4):
        k = k - 0.5
    n = n * (math.pi / (L + 1 if dst_type == 1 else L))
    if dst_type == 1:
        z = (2.0 / (L + 1)) ** 0.5
    elif dst_type == 2:
        z = np.sqrt(_plateau(L, 2, 2, 1) / L)[None, :]   # scale over k (columns)
    elif dst_type == 3:
        z = np.sqrt(_plateau(L, 2, 2, 1) / L)[:, None]   # scale over n (rows)
    elif dst_type == 4:
        z = (2.0 / L) ** 0.5
    else:
        raise ValueError
    W = z * np.sin(k[None, :] * n[:, None])              # W[n_idx, k_idx]
    return jnp.asarray(W, dtype=dtype)


# ----------------------------------------------------------------------------
# Pallas kernel: out tile = x tile @ W tile   (MXU, f32 accumulation)
# ----------------------------------------------------------------------------
def _dst_kernel(x_ref, w_ref, o_ref):
    o_ref[...] = jnp.dot(
        x_ref[...], w_ref[...], preferred_element_type=jnp.float32
    ).astype(o_ref.dtype)


# ----------------------------------------------------------------------------
# Tile selection against an explicit VMEM budget (portable across v5e/v6e/v7x)
# ----------------------------------------------------------------------------
_VMEM_TILE_BUDGET = 28 * 1024 * 1024   # tile-buffer budget (safe on v7x 64 MiB)
_VMEM_LIMIT_BYTES = 48 * 1024 * 1024   # raised scoped-VMEM limit
_TM_CAP = 512                          # big tiles ~85% of HBM roofline


def _round_up(a, m):
    return -(-a // m) * m


def _choose_tiles(Mp, Lp, x_item, w_item):
    # Column tile: keep W fully resident (single column block) when it fits,
    # otherwise stream (Lp, tn) column strips (double-buffered by Pallas).
    if Lp * Lp * w_item <= 8 * 1024 * 1024:
        tn = Lp
    else:
        tn = (12 * 1024 * 1024) // (2 * Lp * w_item)
        tn = max(128, (tn // 128) * 128)
        tn = min(tn, Lp)
    w_bytes = 2 * Lp * tn * w_item                      # double-buffered W
    per_row = 2 * Lp * x_item + 2 * tn * x_item         # x + out, double-buffered
    tm = (_VMEM_TILE_BUDGET - w_bytes) // per_row
    tm = max(8, min(_TM_CAP, (tm // 8) * 8))
    tm = min(tm, max(8, _round_up(Mp, 8)))              # don't exceed the data
    return int(tm), int(tn)


# ----------------------------------------------------------------------------
# Wrapper: apply DST along the last axis of x
# ----------------------------------------------------------------------------
def dst(x, W):
    L = W.shape[0]
    assert x.shape[-1] == L, "dimension of input must equal dst_length"
    orig_shape = x.shape
    orig_dtype = x.dtype

    x2d = x.reshape(-1, L)
    M = x2d.shape[0]

    # Lane packing: fold G independent transforms into the lane dimension so
    # the contraction / output width is >= 128 (lane-dense stores, full MXU).
    G = max(1, -(-128 // L)) if L < 128 else 1
    if G > 1:
        Mg = _round_up(M, G)
        if Mg != M:
            x2d = jnp.pad(x2d, ((0, Mg - M), (0, 0)))
        Lp = G * L
        xp = x2d.reshape(Mg // G, Lp)
        Wp = jnp.kron(jnp.eye(G, dtype=W.dtype), W)    # block-diagonal basis
    else:
        Lp = L
        xp = x2d
        Wp = W
    Mp = xp.shape[0]

    x_item = jnp.dtype(orig_dtype).itemsize
    w_item = jnp.dtype(Wp.dtype).itemsize
    tm, tn = _choose_tiles(Mp, Lp, x_item, w_item)

    grid = (pl.cdiv(Mp, tm), pl.cdiv(Lp, tn))

    cost = pl.CostEstimate(
        flops=int(2 * Mp * Lp * Lp),
        transcendentals=0,
        bytes_accessed=int(x_item * Mp * Lp * 2 + w_item * Lp * Lp),
    )

    out = pl.pallas_call(
        _dst_kernel,
        out_shape=jax.ShapeDtypeStruct((Mp, Lp), orig_dtype),
        grid_spec=pltpu.PrefetchScalarGridSpec(
            num_scalar_prefetch=0,
            grid=grid,
            in_specs=[
                pl.BlockSpec((tm, Lp), lambda i, j: (i, 0)),   # row tile of x
                pl.BlockSpec((Lp, tn), lambda i, j: (0, j)),   # DST basis strip
            ],
            out_specs=pl.BlockSpec((tm, tn), lambda i, j: (i, j)),
        ),
        compiler_params=pltpu.CompilerParams(
            dimension_semantics=("parallel", "parallel"),
            vmem_limit_bytes=_VMEM_LIMIT_BYTES,
        ),
        cost_estimate=cost,
    )(xp, Wp)

    if G > 1:
        out = out.reshape(-1, L)[:M]
    else:
        out = out[:M]
    return out.reshape(orig_shape)


# ----------------------------------------------------------------------------
# Demo / self-check
# ----------------------------------------------------------------------------
def _check(x, W, rtol=1e-4, atol=1e-4):
    y = jax.block_until_ready(dst(x, W))
    assert y.shape == x.shape and y.dtype == x.dtype
    ref = np.asarray(x, dtype=np.float64) @ np.asarray(W, dtype=np.float64)
    np.testing.assert_allclose(np.asarray(y, dtype=np.float64), ref,
                               rtol=rtol, atol=atol)


if __name__ == "__main__":
    key = jax.random.PRNGKey(0)
    k1, k2, k3, k4 = jax.random.split(key, 4)

    # 1) Primary demo: DST-II, L=16 (lane-packed path, G=8 -> 128 lanes).
    W16 = precompute_dst_matrix(16, dst_type=2, dtype=jnp.float32)
    x1 = jax.random.normal(k1, (2, 4, 16), dtype=jnp.float32)
    _check(x1, W16)

    # 2) DST-III, L=16, row count not a multiple of the packing group.
    W16_t3 = precompute_dst_matrix(16, dst_type=3, dtype=jnp.float32)
    x2 = jax.random.normal(k2, (5, 13, 16), dtype=jnp.float32)
    _check(x2, W16_t3)

    # 3) DST-IV, L=12 (128 not divisible by L -> ragged packed lane width).
    W12 = precompute_dst_matrix(12, dst_type=4, dtype=jnp.float32)
    x3 = jax.random.normal(k3, (3, 12), dtype=jnp.float32)
    _check(x3, W12)

    # 4) DST-I, L=128 (unpacked path, ragged final row block via cdiv grid).
    W128 = precompute_dst_matrix(128, dst_type=1, dtype=jnp.float32)
    x4 = jax.random.normal(k4, (9, 128), dtype=jnp.float32)
    _check(x4, W128)

    print("KERNEL_OK")
</pallas_src>

<mosaic_0001>
module attributes {stable_mosaic.version = 11 : i64} {
  func.func @_dst_kernel(%arg0: i32, %arg1: i32, %arg2: memref<8x128xf32, #tpu.memory_space<vmem>>, %arg3: memref<128x128xf32, #tpu.memory_space<vmem>>, %arg4: memref<8x128xf32, #tpu.memory_space<vmem>>) attributes {dimension_semantics = [#tpu.dimension_semantics<parallel>, #tpu.dimension_semantics<parallel>], iteration_bounds = array<i64: 1, 1>, scalar_prefetch = 0 : i64, scratch_operands = 0 : i64, tpu.core_type = #tpu.core_type<tc>, window_params = [{transform_indices = @transform_0, window_bounds = array<i64: 8, 128>}, {transform_indices = @transform_1, window_bounds = array<i64: 128, 128>}, {transform_indices = @transform_2, window_bounds = array<i64: 8, 128>}]} {
    %c0 = arith.constant 0 : index
    %c0_0 = arith.constant 0 : index
    %0 = vector.load %arg2[%c0, %c0_0] : memref<8x128xf32, #tpu.memory_space<vmem>>, vector<8x128xf32>
    %c0_1 = arith.constant 0 : index
    %c0_2 = arith.constant 0 : index
    %1 = vector.load %arg3[%c0_1, %c0_2] : memref<128x128xf32, #tpu.memory_space<vmem>>, vector<128x128xf32>
    %cst = arith.constant dense<0.000000e+00> : vector<8x128xf32>
    %2 = tpu.matmul %0, %1, %cst {dimension_numbers = #tpu.dot_dimension_numbers<[1], [0], [0], [1], [0, 0, 1, 1], [], []>} : vector<8x128xf32>, vector<128x128xf32>, vector<8x128xf32> -> vector<8x128xf32>
    %c0_3 = arith.constant 0 : index
    %c0_4 = arith.constant 0 : index
    %3 = vector.load %arg4[%c0_3, %c0_4] : memref<8x128xf32, #tpu.memory_space<vmem>>, vector<8x128xf32>
    tpu.vector_store %arg4[%c0_3, %c0_4], %2 {strides = array<i32>} : memref<8x128xf32, #tpu.memory_space<vmem>>, vector<8x128xf32>,
    return
  }
  func.func @transform_0(%arg0: i32, %arg1: i32) -> (i32, i32) {
    %c0_i32 = arith.constant 0 : i32
    %c0_i32_0 = arith.constant 0 : i32
    return %arg0, %c0_i32 : i32, i32
  }
  func.func @transform_1(%arg0: i32, %arg1: i32) -> (i32, i32) {
    %c0_i32 = arith.constant 0 : i32
    %c0_i32_0 = arith.constant 0 : i32
    return %c0_i32, %arg1 : i32, i32
  }
  func.func @transform_2(%arg0: i32, %arg1: i32) -> (i32, i32) {
    %c0_i32 = arith.constant 0 : i32
    return %arg0, %arg1 : i32, i32
  }
}

</mosaic_0001>

<llo_original>
// kernel: tpu_custom_call.1
$region0: #{tpu_custom_call.1}
  #allocation0 [shape = 'u32[]', space=smem, size = 0x4, offset = 0x4, fixed_abs, tag = 'smem constant byte address 0x4 - core index']
  #allocation1 [shape = 'u32[144,128]{1,0:T(1,128)}', space=vmem, size = 0x12000, scoped, tag = 'internal scratch']
  %s0 = inlined_call_operand.hbm [shape: f32[1,128], index: 0, kind: input, shape index: {}]
  %s1 = inlined_call_operand.hbm [shape: f32[128,128], index: 1, kind: input, shape index: {}]
  %s2 = inlined_call_operand.hbm [shape: f32[1,128], index: 2, kind: output, shape index: {}]
  %s3 = sld [smem:[#allocation0]]
  $region26: #{tpu_custom_call.1} parent=0
    _
  %s5 = ssub.s32 1, %s3
  %s6 = scalar_select 0, %s5, %s3
  $region1: #{tpu_custom_call.1} parent=0
    #allocation2 [shape = 'u8[4096]{0}', space=vmem, size = 0x1000, scoped, tag = 'input window, operand 0, single buffered']
    #allocation3 [shape = 's32[1]{0}', space=sflag, size = 0x4, scoped, tag = 'scoped memory for tpu_custom_call.1']
    #allocation4 [shape = 's32[1]{0}', space=sflag, size = 0x4, scoped, tag = 'scoped memory for tpu_custom_call.1']
    #allocation5 [shape = 'u8[65536]{0}', space=vmem, size = 0x10000, scoped, tag = 'input window, operand 1, single buffered']
    #allocation6 [shape = 's32[1]{0}', space=sflag, size = 0x4, scoped, tag = 'scoped memory for tpu_custom_call.1']
    #allocation7 [shape = 'u8[4096]{0}', space=vmem, size = 0x1000, scoped, tag = 'output window, operand 0, single buffered']
    %7 = vsyncpa [#allocation3], 0
    %8 = vsyncpa [#allocation6], 0
    %9 = vsyncpa [#allocation4], 0
    // Predicated region
    $region2: #{tpu_custom_call.1} parent=1 // pred_check
      _
    $region3: #{tpu_custom_call.1} parent=1 // pred_check_branch
      %11 = sbr.rel (0) target = $region5
    $region4: #{tpu_custom_call.1} parent=1 // pred_region
      %s13 = ssub.s32 128, 16
      %14 = vsyncadd [#allocation3], %s13
      %s15 = sshll.u32 [#allocation2], 4
      %s16 = int_to_ptr.vmem [resolvable:$true] %s15
      %21 = dma.hbm_to_vmem [thread:$0]  %s0, 16, %s16, [#allocation3], 16, 16, 1
    $region5: #{tpu_custom_call.1} parent=1 // pred_fallthru
      _
    // Predicated region
    $region6: #{tpu_custom_call.1} parent=1 // pred_check
      _
    $region7: #{tpu_custom_call.1} parent=1 // pred_check_branch
      %23 = sbr.rel (0) target = $region9
    $region8: #{tpu_custom_call.1} parent=1 // pred_region
      %s25 = ssub.s32 2048, 2048
      %26 = vsyncadd [#allocation6], %s25
      %s27 = sshll.u32 [#allocation5], 4
      %s28 = int_to_ptr.vmem [resolvable:$true] %s27
      %33 = dma.hbm_to_vmem [thread:$0]  %s1, 2048, %s28, [#allocation6], 128, 128, 8
    $region9: #{tpu_custom_call.1} parent=1 // pred_fallthru
      _
    // Predicated region
    $region10: #{tpu_custom_call.1} parent=1 // pred_check
      _
    $region11: #{tpu_custom_call.1} parent=1 // pred_check_branch
      %35 = sbr.rel (0) target = $region13
    $region12: #{tpu_custom_call.1} parent=1 // pred_region
      %36 = dma.done [#allocation3], 128
    $region13: #{tpu_custom_call.1} parent=1 // pred_fallthru
      _
    // Predicated region
    $region14: #{tpu_custom_call.1} parent=1 // pred_check
      _
    $region15: #{tpu_custom_call.1} parent=1 // pred_check_branch
      %38 = sbr.rel (0) target = $region17
    $region16: #{tpu_custom_call.1} parent=1 // pred_region
      %39 = dma.done [#allocation6], 2048
    $region17: #{tpu_custom_call.1} parent=1 // pred_fallthru
      _
    %v40 = vld [vmem:[#allocation2] sm:$0xff]
    %v41 = vld [vmem:[#allocation5] sm:$0xff]
    %v42 = vld [vmem:[#allocation5 + $0x8] sm:$0xff]
    %v43 = vld [vmem:[#allocation5 + $0x10] sm:$0xff]
    %v44 = vld [vmem:[#allocation5 + $0x18] sm:$0xff]
    %v45 = vld [vmem:[#allocation5 + $0x20] sm:$0xff]
    %v46 = vld [vmem:[#allocation5 + $0x28] sm:$0xff]
    %v47 = vld [vmem:[#allocation5 + $0x30] sm:$0xff]
    %v48 = vld [vmem:[#allocation5 + $0x38] sm:$0xff]
    %v49 = vld [vmem:[#allocation5 + $0x40] sm:$0xff]
    %v50 = vld [vmem:[#allocation5 + $0x48] sm:$0xff]
    %v51 = vld [vmem:[#allocation5 + $0x50] sm:$0xff]
    %v52 = vld [vmem:[#allocation5 + $0x58] sm:$0xff]
    %v53 = vld [vmem:[#allocation5 + $0x60] sm:$0xff]
    %v54 = vld [vmem:[#allocation5 + $0x68] sm:$0xff]
    %v55 = vld [vmem:[#allocation5 + $0x70] sm:$0xff]
    %v56 = vld [vmem:[#allocation5 + $0x78] sm:$0xff]
    %57 = vmatprep.subr.mxu0 0.0
    %58 = vmatpush1.msra.mxu0 %v41
    %59 = vmatprep.subr.mxu0 0.0
    %60 = vmatpush1.msra.mxu0 %v42
    %61 = vmatprep.subr.mxu0 0.0
    %62 = vmatpush1.msra.mxu0 %v43
    %63 = vmatprep.subr.mxu0 0.0
    %64 = vmatpush1.msra.mxu0 %v44
    %65 = vmatprep.subr.mxu0 0.0
    %66 = vmatpush1.msra.mxu0 %v45
    %67 = vmatprep.subr.mxu0 0.0
    %68 = vmatpush1.msra.mxu0 %v46
    %69 = vmatprep.subr.mxu0 0.0
    %70 = vmatpush1.msra.mxu0 %v47
    %71 = vmatprep.subr.mxu0 0.0
    %72 = vmatpush1.msra.mxu0 %v48
    %73 = vmatprep.subr.mxu0 0.0
    %74 = vmatpush1.msra.mxu0 %v49
    %75 = vmatprep.subr.mxu0 0.0
    %76 = vmatpush1.msra.mxu0 %v50
    %77 = vmatprep.subr.mxu0 0.0
    %78 = vmatpush1.msra.mxu0 %v51
    %79 = vmatprep.subr.mxu0 0.0
    %80 = vmatpush1.msra.mxu0 %v52
    %81 = vmatprep.subr.mxu0 0.0
    %82 = vmatpush1.msra.mxu0 %v53
    %83 = vmatprep.subr.mxu0 0.0
    %84 = vmatpush1.msra.mxu0 %v54
    %85 = vmatprep.subr.mxu0 0.0
    %86 = vmatpush1.msra.mxu0 %v55
    %87 = vmatprep.subr.mxu0 0.0
    %88 = vmatpush1.msra.mxu0 %v56
    %89 = vmatprep.subr.mxu0 0.0
    %90 = vmatpush1.msra.mxu0 0.0
    %91 = vmatprep.subr.mxu0 0.0
    %92 = vmatpush1.msra.mxu0 0.0
    %93 = vmatprep.subr.mxu0 0.0
    %94 = vmatpush1.msra.mxu0 0.0
    %95 = vmatprep.subr.mxu0 0.0
    %96 = vmatpush1.msra.mxu0 0.0
    %97 = vmatprep.subr.mxu0 0.0
    %98 = vmatpush1.msra.mxu0 0.0
    %99 = vmatprep.subr.mxu0 0.0
    %100 = vmatpush1.msra.mxu0 0.0
    %101 = vmatprep.subr.mxu0 0.0
    %102 = vmatpush1.msra.mxu0 0.0
    %103 = vmatprep.subr.mxu0 0.0
    %104 = vmatpush1.msra.mxu0 0.0
    %105 = vmatprep.subr.mxu0 0.0
    %106 = vmatpush1.msra.mxu0 0.0
    %107 = vmatprep.subr.mxu0 0.0
    %108 = vmatpush1.msra.mxu0 0.0
    %109 = vmatprep.subr.mxu0 0.0
    %110 = vmatpush1.msra.mxu0 0.0
    %111 = vmatprep.subr.mxu0 0.0
    %112 = vmatpush1.msra.mxu0 0.0
    %113 = vmatprep.subr.mxu0 0.0
    %114 = vmatpush1.msra.mxu0 0.0
    %115 = vmatprep.subr.mxu0 0.0
    %116 = vmatpush1.msra.mxu0 0.0
    %117 = vmatprep.subr.mxu0 0.0
    %118 = vmatpush1.msra.mxu0 0.0
    %119 = vmatprep.subr.mxu0 0.0
    %120 = vmatpush1.msra.mxu0 0.0
    %121 = vmatprep.mubr.f32.mxu0 0.0
    %122 = vmatmul.mubr.f32.gmra.mrb[0].mxu0 %v40
    %v123 = vpop.f32.mrb[0].mxu0
    %v124 = vadd.f32 0.0, %v123
    %v125 = vpop.f32.mrb[0].mxu0
    %126 = vdwg.mxu0
    %127 = vst [vmem:[#allocation7] sm:$0xff] %v124
    // Predicated region
    $region18: #{tpu_custom_call.1} parent=1 // pred_check
      _
    $region19: #{tpu_custom_call.1} parent=1 // pred_check_branch
      %129 = sbr.rel (0) target = $region21
    $region20: #{tpu_custom_call.1} parent=1 // pred_region
      %s131 = ssub.s32 128, 16
      %132 = vsyncadd [#allocation4], %s131
      %s133 = sshll.u32 [#allocation7], 4
      %s134 = int_to_ptr.vmem [resolvable:$true] %s133
      %139 = dma.vmem_to_hbm [thread:$0]  %s134, 16, %s2, [#allocation4], 16, 16, 1
    $region21: #{tpu_custom_call.1} parent=1 // pred_fallthru
      _
    // Predicated region
    $region22: #{tpu_custom_call.1} parent=1 // pred_check
      _
    $region23: #{tpu_custom_call.1} parent=1 // pred_check_branch
      %141 = sbr.rel (0) target = $region25
    $region24: #{tpu_custom_call.1} parent=1 // pred_region
      %142 = dma.done [#allocation4], 128
    $region25: #{tpu_custom_call.1} parent=1 // pred_fallthru
      _
    %143 = vsyncpa [#allocation3], 1
    %144 = vsyncpa [#allocation6], 1
    %145 = vsyncpa [#allocation4], 1

</llo_original>
